<compile_context>
chip_gen: v5e
topology: v5e:2x2
jax: 0.10.0
libtpu: 0.0.40
codegen_flags: <defaults>
</compile_context>

<pallas_src>
import jax
import jax.numpy as jnp
from jax.experimental import pallas as pl
from jax.experimental.pallas import tpu as pltpu


def _round_up(n, m):
    return ((n + m - 1) // m) * m


def _nbrc_kernel(x_ref, h_ref, wx_ref, bx_ref, wh_ref, bh_ref, o_ref):
    # x_ref, h_ref : (TM, D)
    # wx_ref       : (D, 3H)  columns = [Ua | Uc | U]   (already (in, out) layout)
    # bx_ref       : (1, 3H)  f32
    # wh_ref       : (D, 2H)  columns = [Wa | Wc]
    # bh_ref       : (1, 2H)  f32
    # o_ref        : (TM, H)
    hidden = o_ref.shape[-1]
    mm_dtype = wx_ref.dtype                      # MXU operand dtype (f32 or bf16)

    x = x_ref[...]
    if x.dtype != mm_dtype:
        x = x.astype(mm_dtype)
    h_raw = h_ref[...]
    hf = h_raw.astype(jnp.float32)               # f32 value for the gating math
    hm = h_raw if h_raw.dtype == mm_dtype else h_raw.astype(mm_dtype)

    # Two wide MXU matmuls with f32 accumulation; biases added once to the accumulator.
    xw = jnp.dot(x, wx_ref[...], preferred_element_type=jnp.float32) + bx_ref[...]
    hw = jnp.dot(hm, wh_ref[...], preferred_element_type=jnp.float32) + bh_ref[...]

    # Static, lane-aligned slices of the fused results.
    ua_x = xw[:, :hidden]
    uc_x = xw[:, hidden:2 * hidden]
    u_x = xw[:, 2 * hidden:]
    wa_h = hw[:, :hidden]
    wc_h = hw[:, hidden:]

    # Gating math in f32 (VPU/EUP).
    a = 1.0 + jnp.tanh(ua_x + wa_h)
    c = jax.nn.sigmoid(uc_x + wc_h)
    out = c * hf + (1.0 - c) * jnp.tanh(u_x + a * hf)
    o_ref[...] = out.astype(o_ref.dtype)


def nbrc_pallas(x, h, wx, bx, wh, bh, *, tile_m=None, matmul_dtype=None,
                act_buffers=None):
    """nBRC forward.

    x, h : [..., dims]
    wx   : (3, dims, hidden)  stacked [Ua, Uc, U] weights in (in, out) layout
    bx   : (3, hidden)
    wh   : (2, dims, hidden)  stacked [Wa, Wc]
    bh   : (2, hidden)
    Returns [..., hidden].

    matmul_dtype=jnp.bfloat16 runs the matmuls with bf16 operands / f32 accumulation
    (recommended default on v5e; required for very large D=H on v7x).
    act_buffers lets you sweep the x/h input pipeline depth (None = compiler default).
    """
    n3, dims, hidden = wx.shape
    assert n3 == 3 and wh.shape == (2, dims, hidden)
    assert x.shape == h.shape and x.shape[-1] == dims
    assert dims == hidden, "nBRC elementwise gating requires dims == hidden_dims"

    lead = x.shape[:-1]
    rows = 1
    for d in lead:
        rows *= d
    x2 = x.reshape(rows, dims)
    h2 = h.reshape(rows, dims)

    # One-time fused weight repack outside the kernel: (3,D,H)->(D,3H), (2,D,H)->(D,2H).
    wx_cat = jnp.concatenate([wx[0], wx[1], wx[2]], axis=1)           # (D, 3H)
    wh_cat = jnp.concatenate([wh[0], wh[1]], axis=1)                  # (D, 2H)
    bx_cat = jnp.concatenate([bx[0], bx[1], bx[2]]).reshape(1, 3 * hidden).astype(jnp.float32)
    bh_cat = jnp.concatenate([bh[0], bh[1]]).reshape(1, 2 * hidden).astype(jnp.float32)

    if matmul_dtype is not None:
        wx_cat = wx_cat.astype(matmul_dtype)
        wh_cat = wh_cat.astype(matmul_dtype)
        # x is only ever an MXU operand -> cast in the wrapper to halve its HBM read.
        x2 = x2.astype(matmul_dtype)
        # h stays in its original dtype: its f32 value feeds the gating math.

    # Device VMEM capacity (v5e/v6e: 128 MiB, v7x: 64 MiB per TensorCore).
    try:
        vmem_cap = int(getattr(pltpu.get_tpu_info(), "vmem_capacity_bytes",
                               64 * 1024 * 1024))
    except Exception:  # be conservative if the query is unavailable
        vmem_cap = 64 * 1024 * 1024

    # Row tile: bigger on 128-MiB parts, 512 on v7x.  Multiple of 16 sublanes when x is
    # shipped in a 16-bit dtype, else 8.  No host-side pad: cdiv grid + masked tail.
    if tile_m is None:
        tile_m = 1024 if vmem_cap >= 96 * 1024 * 1024 else 512
    sub = 16 if jnp.dtype(x2.dtype).itemsize == 2 else 8
    tm = max(sub, min(_round_up(tile_m, sub), _round_up(rows, sub)))
    # Megacore: ensure >= 2 grid steps when possible so both v7x TensorCores get work.
    if rows > sub and pl.cdiv(rows, tm) < 2:
        tm = max(sub, _round_up(pl.cdiv(rows, 2), sub))
    grid = (pl.cdiv(rows, tm),)

    x_bytes = jnp.dtype(x2.dtype).itemsize
    h_bytes = jnp.dtype(h2.dtype).itemsize
    o_bytes = jnp.dtype(x.dtype).itemsize
    w_bytes = jnp.dtype(wx_cat.dtype).itemsize

    # Honest VMEM estimate: single-buffered weights (Buffered(1)), double-buffered x/h/out
    # tiles, plus the f32 intermediates the compiler materializes
    # (xw(3H) + hw(2H) + a/c/hf/out temporaries ~ 10 * tm * H floats).
    vmem_est = (5 * dims * hidden * w_bytes + 5 * hidden * 4
                + 2 * tm * dims * (x_bytes + h_bytes)
                + 2 * tm * hidden * o_bytes
                + 10 * tm * hidden * 4)
    vmem_limit = min(max(int(vmem_est * 1.35), 32 * 1024 * 1024),
                     vmem_cap - 8 * 1024 * 1024)
    # TODO(synk): for f32 weights with D=H >~ 1280 on v7x (64 MiB VMEM), add a hidden-axis
    # grid dimension (resident (D, TN) weight slab) or force matmul_dtype=bf16.

    act_mode = None if act_buffers is None else pl.Buffered(act_buffers)

    def row_spec(cols):
        if act_mode is None:
            return pl.BlockSpec((tm, cols), lambda i: (i, 0))
        return pl.BlockSpec((tm, cols), lambda i: (i, 0), pipeline_mode=act_mode)

    cost = pl.CostEstimate(
        flops=2 * rows * dims * 5 * hidden,
        transcendentals=3 * rows * hidden,  # 2x tanh + 1x sigmoid per output element
        bytes_accessed=(rows * dims * (x_bytes + h_bytes)
                        + rows * hidden * o_bytes
                        + 5 * dims * hidden * w_bytes + 5 * hidden * 4))

    out = pl.pallas_call(
        _nbrc_kernel,
        out_shape=jax.ShapeDtypeStruct((rows, hidden), x.dtype),
        grid_spec=pltpu.PrefetchScalarGridSpec(
            num_scalar_prefetch=0,
            grid=grid,
            in_specs=[
                row_spec(dims),                                        # x rows
                row_spec(dims),                                        # h rows
                pl.BlockSpec((dims, 3 * hidden), lambda i: (0, 0),
                             pipeline_mode=pl.Buffered(1)),            # fused Wx (resident)
                pl.BlockSpec((1, 3 * hidden), lambda i: (0, 0),
                             pipeline_mode=pl.Buffered(1)),            # fused bx
                pl.BlockSpec((dims, 2 * hidden), lambda i: (0, 0),
                             pipeline_mode=pl.Buffered(1)),            # fused Wh (resident)
                pl.BlockSpec((1, 2 * hidden), lambda i: (0, 0),
                             pipeline_mode=pl.Buffered(1)),            # fused bh
            ],
            out_specs=pl.BlockSpec((tm, hidden), lambda i: (i, 0)),
        ),
        compiler_params=pltpu.CompilerParams(
            dimension_semantics=("parallel",),
            vmem_limit_bytes=vmem_limit),
        cost_estimate=cost,
    )(x2, h2, wx_cat, bx_cat, wh_cat, bh_cat)

    return out.reshape(*lead, hidden)


def init_nbrc_params(key, dims, hidden_dims, dtype=jnp.float32):
    """PyTorch nn.Linear-style init: U(-1/sqrt(fan_in), 1/sqrt(fan_in)) for W and b."""
    ks = jax.random.split(key, 10)
    bound = 1.0 / (dims ** 0.5)

    def lin(kw, kb):
        w = jax.random.uniform(kw, (dims, hidden_dims), dtype, -bound, bound)
        b = jax.random.uniform(kb, (hidden_dims,), dtype, -bound, bound)
        return w, b

    ua_w, ua_b = lin(ks[0], ks[1])
    wa_w, wa_b = lin(ks[2], ks[3])
    uc_w, uc_b = lin(ks[4], ks[5])
    wc_w, wc_b = lin(ks[6], ks[7])
    u_w, u_b = lin(ks[8], ks[9])

    wx = jnp.stack([ua_w, uc_w, u_w])   # (3, D, H)
    bx = jnp.stack([ua_b, uc_b, u_b])   # (3, H)
    wh = jnp.stack([wa_w, wc_w])        # (2, D, H)
    bh = jnp.stack([wa_b, wc_b])        # (2, H)
    return wx, bx, wh, bh


def nbrc_reference(x, h, wx, bx, wh, bh):
    """Pure-JAX f32 reference of the same forward pass."""
    ua = x @ wx[0] + bx[0]
    uc = x @ wx[1] + bx[1]
    u = x @ wx[2] + bx[2]
    wa = h @ wh[0] + bh[0]
    wc = h @ wh[1] + bh[1]
    a = 1.0 + jnp.tanh(ua + wa)
    c = jax.nn.sigmoid(uc + wc)
    return c * h + (1.0 - c) * jnp.tanh(u + a * h)


if __name__ == "__main__":
    key = jax.random.PRNGKey(0)
    kx, kh, kp = jax.random.split(key, 3)

    batch, seq, dims = 2, 8, 128
    hidden = dims  # nBRC requires hidden_dims == dims for the elementwise gating

    x = jax.random.normal(kx, (batch, seq, dims), jnp.float32)
    h = jax.random.normal(kh, (batch, seq, dims), jnp.float32)
    wx, bx, wh, bh = init_nbrc_params(kp, dims, hidden)

    ref = nbrc_reference(x, h, wx, bx, wh, bh)

    # f32 MXU path (matches PyTorch f32 semantics closely).
    out = nbrc_pallas(x, h, wx, bx, wh, bh)
    out = jax.block_until_ready(out)
    assert out.shape == (batch, seq, hidden)
    assert jnp.allclose(out, ref, atol=1e-3, rtol=1e-3), "f32 path mismatch vs reference"

    # bf16-at-the-MXU path (bf16 operands shipped from HBM, f32 accumulate, f32 gating).
    out_bf16 = nbrc_pallas(x, h, wx, bx, wh, bh, matmul_dtype=jnp.bfloat16)
    out_bf16 = jax.block_until_ready(out_bf16)
    assert out_bf16.shape == (batch, seq, hidden)
    assert jnp.allclose(out_bf16, ref, atol=1e-1, rtol=1e-1), "bf16 path mismatch vs reference"

    print("KERNEL_OK")
</pallas_src>

<mosaic_0001>
module attributes {stable_mosaic.version = 11 : i64} {
  func.func @_nbrc_kernel(%arg0: i32, %arg1: memref<8x128xf32, #tpu.memory_space<vmem>>, %arg2: memref<8x128xf32, #tpu.memory_space<vmem>>, %arg3: memref<128x384xf32, #tpu.memory_space<vmem>>, %arg4: memref<1x384xf32, #tpu.memory_space<vmem>>, %arg5: memref<128x256xf32, #tpu.memory_space<vmem>>, %arg6: memref<1x256xf32, #tpu.memory_space<vmem>>, %arg7: memref<8x128xf32, #tpu.memory_space<vmem>>) attributes {dimension_semantics = [#tpu.dimension_semantics<parallel>], iteration_bounds = array<i64: 2>, scalar_prefetch = 0 : i64, scratch_operands = 0 : i64, tpu.core_type = #tpu.core_type<tc>, window_params = [{transform_indices = @transform_0, window_bounds = array<i64: 8, 128>}, {transform_indices = @transform_1, window_bounds = array<i64: 8, 128>}, {pipeline_mode = #tpu.pipeline_mode<synchronous>, transform_indices = @transform_2, window_bounds = array<i64: 128, 384>}, {pipeline_mode = #tpu.pipeline_mode<synchronous>, transform_indices = @transform_3, window_bounds = array<i64: 1, 384>}, {pipeline_mode = #tpu.pipeline_mode<synchronous>, transform_indices = @transform_4, window_bounds = array<i64: 128, 256>}, {pipeline_mode = #tpu.pipeline_mode<synchronous>, transform_indices = @transform_5, window_bounds = array<i64: 1, 256>}, {transform_indices = @transform_6, window_bounds = array<i64: 8, 128>}]} {
    %c0 = arith.constant 0 : index
    %c0_0 = arith.constant 0 : index
    %0 = vector.load %arg1[%c0, %c0_0] : memref<8x128xf32, #tpu.memory_space<vmem>>, vector<8x128xf32>
    %c0_1 = arith.constant 0 : index
    %c0_2 = arith.constant 0 : index
    %1 = vector.load %arg2[%c0_1, %c0_2] : memref<8x128xf32, #tpu.memory_space<vmem>>, vector<8x128xf32>
    %c0_3 = arith.constant 0 : index
    %c0_4 = arith.constant 0 : index
    %2 = vector.load %arg3[%c0_3, %c0_4] : memref<128x384xf32, #tpu.memory_space<vmem>>, vector<128x384xf32>
    %cst = arith.constant dense<0.000000e+00> : vector<8x384xf32>
    %3 = tpu.matmul %0, %2, %cst {dimension_numbers = #tpu.dot_dimension_numbers<[1], [0], [0], [1], [0, 0, 1, 1], [], []>} : vector<8x128xf32>, vector<128x384xf32>, vector<8x384xf32> -> vector<8x384xf32>
    %c0_5 = arith.constant 0 : index
    %c0_6 = arith.constant 0 : index
    %4 = vector.load %arg4[%c0_5, %c0_6] : memref<1x384xf32, #tpu.memory_space<vmem>>, vector<1x384xf32>
    %5 = vector.broadcast %4 : vector<1x384xf32> to vector<8x384xf32>
    %6 = arith.addf %3, %5 : vector<8x384xf32>
    %c0_7 = arith.constant 0 : index
    %c0_8 = arith.constant 0 : index
    %7 = vector.load %arg5[%c0_7, %c0_8] : memref<128x256xf32, #tpu.memory_space<vmem>>, vector<128x256xf32>
    %cst_9 = arith.constant dense<0.000000e+00> : vector<8x256xf32>
    %8 = tpu.matmul %1, %7, %cst_9 {dimension_numbers = #tpu.dot_dimension_numbers<[1], [0], [0], [1], [0, 0, 1, 1], [], []>} : vector<8x128xf32>, vector<128x256xf32>, vector<8x256xf32> -> vector<8x256xf32>
    %c0_10 = arith.constant 0 : index
    %c0_11 = arith.constant 0 : index
    %9 = vector.load %arg6[%c0_10, %c0_11] : memref<1x256xf32, #tpu.memory_space<vmem>>, vector<1x256xf32>
    %10 = vector.broadcast %9 : vector<1x256xf32> to vector<8x256xf32>
    %11 = arith.addf %8, %10 : vector<8x256xf32>
    %12 = vector.extract_strided_slice %6 {offsets = [0, 0], sizes = [8, 128], strides = [1, 1]} : vector<8x384xf32> to vector<8x128xf32>
    %13 = vector.extract_strided_slice %6 {offsets = [0, 128], sizes = [8, 128], strides = [1, 1]} : vector<8x384xf32> to vector<8x128xf32>
    %14 = vector.extract_strided_slice %6 {offsets = [0, 256], sizes = [8, 128], strides = [1, 1]} : vector<8x384xf32> to vector<8x128xf32>
    %15 = vector.extract_strided_slice %11 {offsets = [0, 0], sizes = [8, 128], strides = [1, 1]} : vector<8x256xf32> to vector<8x128xf32>
    %16 = vector.extract_strided_slice %11 {offsets = [0, 128], sizes = [8, 128], strides = [1, 1]} : vector<8x256xf32> to vector<8x128xf32>
    %17 = arith.addf %12, %15 : vector<8x128xf32>
    %18 = math.tanh %17 : vector<8x128xf32>
    %cst_12 = arith.constant 1.000000e+00 : f32
    %19 = vector.broadcast %cst_12 : f32 to vector<8x128xf32>
    %20 = arith.addf %19, %18 : vector<8x128xf32>
    %21 = arith.addf %13, %16 : vector<8x128xf32>
    %22 = arith.negf %21 : vector<8x128xf32>
    %23 = math.exp %22 : vector<8x128xf32>
    %cst_13 = arith.constant 1.000000e+00 : f32
    %24 = vector.broadcast %cst_13 : f32 to vector<8x128xf32>
    %25 = arith.addf %24, %23 : vector<8x128xf32>
    %26 = arith.divf %24, %25 : vector<8x128xf32>
    %27 = arith.mulf %26, %1 : vector<8x128xf32>
    %cst_14 = arith.constant 1.000000e+00 : f32
    %28 = vector.broadcast %cst_14 : f32 to vector<8x128xf32>
    %29 = arith.subf %28, %26 : vector<8x128xf32>
    %30 = arith.mulf %20, %1 : vector<8x128xf32>
    %31 = arith.addf %14, %30 : vector<8x128xf32>
    %32 = math.tanh %31 : vector<8x128xf32>
    %33 = arith.mulf %29, %32 : vector<8x128xf32>
    %34 = arith.addf %27, %33 : vector<8x128xf32>
    %c0_15 = arith.constant 0 : index
    %c0_16 = arith.constant 0 : index
    %35 = vector.load %arg7[%c0_15, %c0_16] : memref<8x128xf32, #tpu.memory_space<vmem>>, vector<8x128xf32>
    tpu.vector_store %arg7[%c0_15, %c0_16], %34 {strides = array<i32>} : memref<8x128xf32, #tpu.memory_space<vmem>>, vector<8x128xf32>,
    return
  }
  func.func @transform_0(%arg0: i32) -> (i32, i32) {
    %c0_i32 = arith.constant 0 : i32
    %c0_i32_0 = arith.constant 0 : i32
    return %arg0, %c0_i32 : i32, i32
  }
  func.func @transform_1(%arg0: i32) -> (i32, i32) {
    %c0_i32 = arith.constant 0 : i32
    %c0_i32_0 = arith.constant 0 : i32
    return %arg0, %c0_i32 : i32, i32
  }
  func.func @transform_2(%arg0: i32) -> (i32, i32) {
    %c0_i32 = arith.constant 0 : i32
    %c0_i32_0 = arith.constant 0 : i32
    %c0_i32_1 = arith.constant 0 : i32
    return %c0_i32, %c0_i32_0 : i32, i32
  }
  func.func @transform_3(%arg0: i32) -> (i32, i32) {
    %c0_i32 = arith.constant 0 : i32
    %c0_i32_0 = arith.constant 0 : i32
    %c0_i32_1 = arith.constant 0 : i32
    return %c0_i32, %c0_i32_0 : i32, i32
  }
  func.func @transform_4(%arg0: i32) -> (i32, i32) {
    %c0_i32 = arith.constant 0 : i32
    %c0_i32_0 = arith.constant 0 : i32
    %c0_i32_1 = arith.constant 0 : i32
    return %c0_i32, %c0_i32_0 : i32, i32
  }
  func.func @transform_5(%arg0: i32) -> (i32, i32) {
    %c0_i32 = arith.constant 0 : i32
    %c0_i32_0 = arith.constant 0 : i32
    %c0_i32_1 = arith.constant 0 : i32
    return %c0_i32, %c0_i32_0 : i32, i32
  }
  func.func @transform_6(%arg0: i32) -> (i32, i32) {
    %c0_i32 = arith.constant 0 : i32
    %c0_i32_0 = arith.constant 0 : i32
    return %arg0, %c0_i32 : i32, i32
  }
}

</mosaic_0001>

<llo_original>
// kernel: tpu_custom_call.1
$region0: #{tpu_custom_call.1}
  #allocation0 [shape = 'u32[]', space=smem, size = 0x4, offset = 0x4, fixed_abs, tag = 'smem constant byte address 0x4 - core index']
  #allocation1 [shape = 'u32[72,128]{1,0:T(1,128)}', space=vmem, size = 0x9000, scoped, tag = 'internal scratch']
  %s0 = inlined_call_operand.hbm [shape: f32[16,128], index: 0, kind: input, shape index: {}]
  %s1 = inlined_call_operand.hbm [shape: f32[16,128], index: 1, kind: input, shape index: {}]
  %s2 = inlined_call_operand.hbm [shape: f32[128,384], index: 2, kind: input, shape index: {}]
  %s3 = inlined_call_operand.hbm [shape: f32[1,384], index: 3, kind: input, shape index: {}]
  %s4 = inlined_call_operand.hbm [shape: f32[128,256], index: 4, kind: input, shape index: {}]
  %s5 = inlined_call_operand.vmem [shape: f32[1,256], index: 5, kind: input, shape index: {}]
  %s6 = inlined_call_operand.hbm [shape: f32[16,128], index: 6, kind: output, shape index: {}]
  %s7 = sld [smem:[#allocation0]]
  $region77: #{tpu_custom_call.1} parent=0
    _
  %s9 = ssub.s32 1, %s7
  %s10 = scalar_select 0, %s9, %s7
  $region1: #{tpu_custom_call.1} parent=0
    #allocation2 [shape = 'u8[8192]{0}', space=vmem, size = 0x2000, scoped, tag = 'input window, operand 0']
    #allocation3 [shape = 's32[2]{0}', space=sflag, size = 0x8, scoped, tag = 'scoped memory for tpu_custom_call.1']
    #allocation4 [shape = 's32[2]{0}', space=sflag, size = 0x8, scoped, tag = 'scoped memory for tpu_custom_call.1']
    #allocation5 [shape = 'u8[8192]{0}', space=vmem, size = 0x2000, scoped, tag = 'input window, operand 1']
    #allocation6 [shape = 's32[2]{0}', space=sflag, size = 0x8, scoped, tag = 'scoped memory for tpu_custom_call.1']
    #allocation7 [shape = 'u8[196608]{0}', space=vmem, size = 0x30000, scoped, tag = 'input window, operand 2, single buffered']
    #allocation8 [shape = 'u8[1536]{0}', space=vmem, size = 0x800, scoped, tag = 'input window, operand 3, single buffered']
    #allocation9 [shape = 's32[1]{0}', space=sflag, size = 0x4, scoped, tag = 'scoped memory for tpu_custom_call.1']
    #allocation10 [shape = 'u8[131072]{0}', space=vmem, size = 0x20000, scoped, tag = 'input window, operand 4, single buffered']
    #allocation11 [shape = 'u8[8192]{0}', space=vmem, size = 0x2000, scoped, tag = 'output window, operand 0']
    %11 = vsyncpa [#allocation3], 0
    %s12 = scalar_lea.sflag [#allocation3], 1
    %13 = vsyncpa %s12, 0
    %14 = vsyncpa [#allocation6], 0
    %s15 = scalar_lea.sflag [#allocation6], 1
    %16 = vsyncpa %s15, 0
    %17 = vsyncpa [#allocation9], 0
    %18 = vsyncpa [#allocation4], 0
    %s19 = scalar_lea.sflag [#allocation4], 1
    %20 = vsyncpa %s19, 0
    loop: start=0, step=1, limit=4
    $region2: #{tpu_custom_call.1} parent=1 // loop_pre_header
      _
    $region3: #{tpu_custom_call.1} parent=1 // loop_header
      %s22 = sphi 0, %s26
      %p23 = scmp.ge.s32.totalorder %s22, 4
      %s32 = sphi 0, %s34
      %s35 = sphi 0, %s32
      %s36 = sphi 0, %s35
      %s52 = sphi 0, %s36
      %s58 = sphi 0, %s60
      %s61 = sphi 0, %s58
      %s62 = sphi 0, %s61
      %s78 = sphi 0, %s62
      %s82 = sphi 0, %s82
      %s84 = sphi 0, %s82
      %s85 = sphi 0, %s84
      %s99 = sphi 0, %s85
      %s103 = sphi 0, %s103
      %s105 = sphi 0, %s103
      %s106 = sphi 0, %s105
      %s120 = sphi 0, %s106
      %s124 = sphi 0, %s124
      %s126 = sphi 0, %s124
      %s127 = sphi 0, %s126
      %s141 = sphi 0, %s127
      %s145 = sphi 0, %s145
      %s147 = sphi 0, %s145
      %s148 = sphi 0, %s147
      %s162 = sphi 0, %s148
      %s168 = sphi 0, %s170
      %s171 = sphi 0, %s168
      %s172 = sphi 0, %s171
      %s188 = sphi 0, %s172
    $region4: #{tpu_custom_call.1} parent=1 // loop_header_branch
      %25 = sbr.rel (%p23) target = $region8
    $region5: #{tpu_custom_call.1} parent=1 // loop_body
      %s27 = ssub.s32 %s22, 1
      %s28 = ssub.s32 %s22, 2
      %s29 = sadd.s32 %s22, 1
      %s30 = ssub.s32 %s22, %s29
      %p31 = scmp.eq.s32.totalorder %s30, 0
      %s33 = sadd.s32 %s32, 1
      %s34 = scalar_select %p31, %s32, %s33
      %p37 = pneg %p31
      %p38 = scmp.eq.s32.totalorder %s22, 1
      %p39 = por %p37, %p38
      %p40 = scmp.ne.s32.totalorder %s32, %s35
      %p41 = scmp.eq.s32.totalorder %s22, 0
      %p42 = por %p40, %p41
      %p43 = scmp.ne.s32.totalorder %s32, %s35
      %p44 = scmp.eq.s32.totalorder %s27, 1
      %p45 = por %p43, %p44
      %p46 = scmp.ne.s32.totalorder %s35, %s36
      %p47 = scmp.eq.s32.totalorder %s27, 0
      %p48 = por %p46, %p47
      %p49 = scmp.ne.s32.totalorder %s35, %s36
      %p50 = scmp.eq.s32.totalorder %s28, 1
      %p51 = por %p49, %p50
      %p53 = scmp.ne.s32.totalorder %s36, %s52
      %p54 = scmp.eq.s32.totalorder %s28, 0
      %p55 = por %p53, %p54
      %s56 = ssub.s32 %s22, %s29
      %p57 = scmp.eq.s32.totalorder %s56, 0
      %s59 = sadd.s32 %s58, 1
      %s60 = scalar_select %p57, %s58, %s59
      %p63 = pneg %p57
      %p64 = scmp.eq.s32.totalorder %s22, 1
      %p65 = por %p63, %p64
      %p66 = scmp.ne.s32.totalorder %s58, %s61
      %p67 = scmp.eq.s32.totalorder %s22, 0
      %p68 = por %p66, %p67
      %p69 = scmp.ne.s32.totalorder %s58, %s61
      %p70 = scmp.eq.s32.totalorder %s27, 1
      %p71 = por %p69, %p70
      %p72 = scmp.ne.s32.totalorder %s61, %s62
      %p73 = scmp.eq.s32.totalorder %s27, 0
      %p74 = por %p72, %p73
      %p75 = scmp.ne.s32.totalorder %s61, %s62
      %p76 = scmp.eq.s32.totalorder %s28, 1
      %p77 = por %p75, %p76
      %p79 = scmp.ne.s32.totalorder %s62, %s78
      %p80 = scmp.eq.s32.totalorder %s28, 0
      %p81 = por %p79, %p80
      %s83 = sadd.s32 %s82, 1
      %p86 = scmp.eq.s32.totalorder %s22, 1
      %p87 = scmp.ne.s32.totalorder %s82, %s84
      %p88 = scmp.eq.s32.totalorder %s22, 0
      %p89 = por %p87, %p88
      %p90 = scmp.ne.s32.totalorder %s82, %s84
      %p91 = scmp.eq.s32.totalorder %s27, 1
      %p92 = por %p90, %p91
      %p93 = scmp.ne.s32.totalorder %s84, %s85
      %p94 = scmp.eq.s32.totalorder %s27, 0
      %p95 = por %p93, %p94
      %p96 = scmp.ne.s32.totalorder %s84, %s85
      %p97 = scmp.eq.s32.totalorder %s28, 1
      %p98 = por %p96, %p97
      %p100 = scmp.ne.s32.totalorder %s85, %s99
      %p101 = scmp.eq.s32.totalorder %s28, 0
      %p102 = por %p100, %p101
      %s104 = sadd.s32 %s103, 1
      %p107 = scmp.eq.s32.totalorder %s22, 1
      %p108 = scmp.ne.s32.totalorder %s103, %s105
      %p109 = scmp.eq.s32.totalorder %s22, 0
      %p110 = por %p108, %p109
      %p111 = scmp.ne.s32.totalorder %s103, %s105
      %p112 = scmp.eq.s32.totalorder %s27, 1
      %p113 = por %p111, %p112
      %p114 = scmp.ne.s32.totalorder %s105, %s106
      %p115 = scmp.eq.s32.totalorder %s27, 0
      %p116 = por %p114, %p115
      %p117 = scmp.ne.s32.totalorder %s105, %s106
      %p118 = scmp.eq.s32.totalorder %s28, 1
      %p119 = por %p117, %p118
      %p121 = scmp.ne.s32.totalorder %s106, %s120
      %p122 = scmp.eq.s32.totalorder %s28, 0
      %p123 = por %p121, %p122
      %s125 = sadd.s32 %s124, 1
      %p128 = scmp.eq.s32.totalorder %s22, 1
      %p129 = scmp.ne.s32.totalorder %s124, %s126
      %p130 = scmp.eq.s32.totalorder %s22, 0
      %p131 = por %p129, %p130
      %p132 = scmp.ne.s32.totalorder %s124, %s126
      %p133 = scmp.eq.s32.totalorder %s27, 1
      %p134 = por %p132, %p133
      %p135 = scmp.ne.s32.totalorder %s126, %s127
      %p136 = scmp.eq.s32.totalorder %s27, 0
      %p137 = por %p135, %p136
      %p138 = scmp.ne.s32.totalorder %s126, %s127
      %p139 = scmp.eq.s32.totalorder %s28, 1
      %p140 = por %p138, %p139
      %p142 = scmp.ne.s32.totalorder %s127, %s141
      %p143 = scmp.eq.s32.totalorder %s28, 0
      %p144 = por %p142, %p143
      %s146 = sadd.s32 %s145, 1
      %p149 = scmp.eq.s32.totalorder %s22, 1
      %p150 = scmp.ne.s32.totalorder %s145, %s147
      %p151 = scmp.eq.s32.totalorder %s22, 0
      %p152 = por %p150, %p151
      %p153 = scmp.ne.s32.totalorder %s145, %s147
      %p154 = scmp.eq.s32.totalorder %s27, 1
      %p155 = por %p153, %p154
      %p156 = scmp.ne.s32.totalorder %s147, %s148
      %p157 = scmp.eq.s32.totalorder %s27, 0
      %p158 = por %p156, %p157
      %p159 = scmp.ne.s32.totalorder %s147, %s148
      %p160 = scmp.eq.s32.totalorder %s28, 1
      %p161 = por %p159, %p160
      %p163 = scmp.ne.s32.totalorder %s148, %s162
      %p164 = scmp.eq.s32.totalorder %s28, 0
      %p165 = por %p163, %p164
      %s166 = ssub.s32 %s22, %s29
      %p167 = scmp.eq.s32.totalorder %s166, 0
      %s169 = sadd.s32 %s168, 1
      %s170 = scalar_select %p167, %s168, %s169
      %p173 = pneg %p167
      %p174 = scmp.eq.s32.totalorder %s22, 1
      %p175 = por %p173, %p174
      %p176 = scmp.ne.s32.totalorder %s168, %s171
      %p177 = scmp.eq.s32.totalorder %s22, 0
      %p178 = por %p176, %p177
      %p179 = scmp.ne.s32.totalorder %s168, %s171
      %p180 = scmp.eq.s32.totalorder %s27, 1
      %p181 = por %p179, %p180
      %p182 = scmp.ne.s32.totalorder %s171, %s172
      %p183 = scmp.eq.s32.totalorder %s27, 0
      %p184 = por %p182, %p183
      %p185 = scmp.ne.s32.totalorder %s171, %s172
      %p186 = scmp.eq.s32.totalorder %s28, 1
      %p187 = por %p185, %p186
      %p189 = scmp.ne.s32.totalorder %s172, %s188
      %p190 = scmp.eq.s32.totalorder %s28, 0
      %p191 = por %p189, %p190
      %p192 = scmp.le.s32.totalorder 1, %s22
      %p193 = scmp.lt.s32.totalorder %s22, 3
      %p194 = pnand %p192, %p193
      %p195 = pneg %p194
      // Predicated region
      $region9: #{tpu_custom_call.1} parent=5 // pred_check
        _
      $region10: #{tpu_custom_call.1} parent=5 // pred_check_branch
        %197 = sbr.rel (%p194) target = $region12
      $region11: #{tpu_custom_call.1} parent=5 // pred_region
        %s198 = ssub.s32 %s22, 1
        // Predicated region
        $region13: #{tpu_custom_call.1} parent=11 // pred_check
          %p199 = pneg %p95
        $region14: #{tpu_custom_call.1} parent=11 // pred_check_branch
          %201 = sbr.rel (%p199) target = $region16
        $region15: #{tpu_custom_call.1} parent=11 // pred_region
          %203 = vsyncadd [#allocation6], 0
          %s204 = sshll.u32 %s2, 4
          %s205 = int_to_ptr.hbm [resolvable:$true] %s204
          %s206 = sshll.u32 [#allocation7], 4
          %s207 = int_to_ptr.vmem [resolvable:$true] %s206
          %212 = dma.hbm_to_vmem [thread:$0]  %s205, 6144, %s207, [#allocation6], 384, 384, 24
        $region16: #{tpu_custom_call.1} parent=11 // pred_fallthru
          _
        // Predicated region
        $region17: #{tpu_custom_call.1} parent=11 // pred_check
          %p213 = pneg %p116
        $region18: #{tpu_custom_call.1} parent=11 // pred_check_branch
          %215 = sbr.rel (%p213) target = $region20
        $region19: #{tpu_custom_call.1} parent=11 // pred_region
          %217 = vsyncadd [#allocation9], 0
          %s219 = sshll.u32 %s3, 4
          %s220 = int_to_ptr.hbm [resolvable:$true] %s219
          %s221 = sshll.u32 [#allocation8], 4
          %s222 = int_to_ptr.vmem [resolvable:$true] %s221
          %224 = dma.hbm_to_vmem [thread:$0]  %s220, 48, %s222, [#allocation9]
        $region20: #{tpu_custom_call.1} parent=11 // pred_fallthru
          _
        // Predicated region
        $region21: #{tpu_custom_call.1} parent=11 // pred_check
          %p225 = pneg %p137
        $region22: #{tpu_custom_call.1} parent=11 // pred_check_branch
          %227 = sbr.rel (%p225) target = $region24
        $region23: #{tpu_custom_call.1} parent=11 // pred_region
          %229 = vsyncadd [#allocation9], 0
          %s230 = sshll.u32 %s4, 4
          %s231 = int_to_ptr.hbm [resolvable:$true] %s230
          %s232 = sshll.u32 [#allocation10], 4
          %s233 = int_to_ptr.vmem [resolvable:$true] %s232
          %238 = dma.hbm_to_vmem [thread:$0]  %s231, 4096, %s233, [#allocation9], 256, 256, 16
        $region24: #{tpu_custom_call.1} parent=11 // pred_fallthru
          _
        // Predicated region
        $region25: #{tpu_custom_call.1} parent=11 // pred_check
          %p239 = pneg %p158
        $region26: #{tpu_custom_call.1} parent=11 // pred_check_branch
          %241 = sbr.rel (%p239) target = $region28
        $region27: #{tpu_custom_call.1} parent=11 // pred_region
          _
        $region28: #{tpu_custom_call.1} parent=11 // pred_fallthru
          _
      $region12: #{tpu_custom_call.1} parent=5 // pred_fallthru
        _
      %p242 = scmp.lt.s32.totalorder %s22, 2
      // Predicated region
      $region29: #{tpu_custom_call.1} parent=5 // pred_check
        %p243 = pneg %p242
      $region30: #{tpu_custom_call.1} parent=5 // pred_check_branch
        %245 = sbr.rel (%p243) target = $region32
      $region31: #{tpu_custom_call.1} parent=5 // pred_region
        // Predicated region
        $region33: #{tpu_custom_call.1} parent=31 // pred_check
          %p246 = pneg %p42
        $region34: #{tpu_custom_call.1} parent=31 // pred_check_branch
          %248 = sbr.rel (%p246) target = $region36
        $region35: #{tpu_custom_call.1} parent=31 // pred_region
          %s249 = sand.u32 %s32, 1
          %s250 = scalar_lea.sflag [#allocation3], %s249
          %s251 = sand.u32 %s32, 1
          %s252 = smul.addr %s251, 8
          %s253 = scalar_lea.vmem [#allocation2], %s252
          %255 = vsyncadd %s250, 0
          %s256 = smul.addr %s22, 8
          %s257 = scalar_lea.hbm %s0, %s256
          %s259 = sshll.u32 %s257, 4
          %s260 = int_to_ptr.hbm [resolvable:$true] %s259
          %s261 = sshll.u32 %s253, 4
          %s262 = int_to_ptr.vmem [resolvable:$true] %s261
          %264 = dma.hbm_to_vmem [thread:$0]  %s260, 128, %s262, %s250
        $region36: #{tpu_custom_call.1} parent=31 // pred_fallthru
          _
        // Predicated region
        $region37: #{tpu_custom_call.1} parent=31 // pred_check
          %p265 = pneg %p68
        $region38: #{tpu_custom_call.1} parent=31 // pred_check_branch
          %267 = sbr.rel (%p265) target = $region40
        $region39: #{tpu_custom_call.1} parent=31 // pred_region
          %s268 = sand.u32 %s22, 1
          %s269 = scalar_lea.sflag [#allocation6], %s268
          %s270 = sand.u32 %s58, 1
          %s271 = smul.addr %s270, 8
          %s272 = scalar_lea.vmem [#allocation5], %s271
          %274 = vsyncadd %s269, 0
          %s275 = smul.addr %s22, 8
          %s276 = scalar_lea.hbm %s1, %s275
          %s278 = sshll.u32 %s276, 4
          %s279 = int_to_ptr.hbm [resolvable:$true] %s278
          %s280 = sshll.u32 %s272, 4
          %s281 = int_to_ptr.vmem [resolvable:$true] %s280
          %283 = dma.hbm_to_vmem [thread:$0]  %s279, 128, %s281, %s269
        $region40: #{tpu_custom_call.1} parent=31 // pred_fallthru
          _
      $region32: #{tpu_custom_call.1} parent=5 // pred_fallthru
        _
      %p284 = scmp.le.s32.totalorder 1, %s22
      %p285 = scmp.lt.s32.totalorder %s22, 3
      %p286 = pnand %p284, %p285
      %p287 = pneg %p286
      // Predicated region
      $region41: #{tpu_custom_call.1} parent=5 // pred_check
        _
      $region42: #{tpu_custom_call.1} parent=5 // pred_check_branch
        %289 = sbr.rel (%p286) target = $region44
      $region43: #{tpu_custom_call.1} parent=5 // pred_region
        %s290 = ssub.s32 %s22, 1
        %s291 = sand.u32 %s35, 1
        %s292 = scalar_lea.sflag [#allocation3], %s291
        %s293 = sand.u32 %s35, 1
        %s294 = smul.addr %s293, 8
        %s295 = scalar_lea.vmem [#allocation2], %s294
        // Predicated region
        $region45: #{tpu_custom_call.1} parent=43 // pred_check
          %p296 = pneg %p48
        $region46: #{tpu_custom_call.1} parent=43 // pred_check_branch
          %298 = sbr.rel (%p296) target = $region48
        $region47: #{tpu_custom_call.1} parent=43 // pred_region
          %300 = dma.done %s292, 128
        $region48: #{tpu_custom_call.1} parent=43 // pred_fallthru
          _
        %s301 = sand.u32 %s27, 1
        %s302 = scalar_lea.sflag [#allocation6], %s301
        %s303 = sand.u32 %s61, 1
        %s304 = smul.addr %s303, 8
        %s305 = scalar_lea.vmem [#allocation5], %s304
        // Predicated region
        $region49: #{tpu_custom_call.1} parent=43 // pred_check
          %p306 = pneg %p74
        $region50: #{tpu_custom_call.1} parent=43 // pred_check_branch
          %308 = sbr.rel (%p306) target = $region52
        $region51: #{tpu_custom_call.1} parent=43 // pred_region
          %310 = dma.done %s302, 128
        $region52: #{tpu_custom_call.1} parent=43 // pred_fallthru
          _
        // Predicated region
        $region53: #{tpu_custom_call.1} parent=43 // pred_check
          %p311 = pneg %p95
        $region54: #{tpu_custom_call.1} parent=43 // pred_check_branch
          %313 = sbr.rel (%p311) target = $region56
        $region55: #{tpu_custom_call.1} parent=43 // pred_region
          %315 = dma.done [#allocation6], 6144
        $region56: #{tpu_custom_call.1} parent=43 // pred_fallthru
          _
        // Predicated region
        $region57: #{tpu_custom_call.1} parent=43 // pred_check
          %p316 = pneg %p116
        $region58: #{tpu_custom_call.1} parent=43 // pred_check_branch
          %318 = sbr.rel (%p316) target = $region60
        $region59: #{tpu_custom_call.1} parent=43 // pred_region
          %320 = dma.done [#allocation9], 48
        $region60: #{tpu_custom_call.1} parent=43 // pred_fallthru
          _
        // Predicated region
        $region61: #{tpu_custom_call.1} parent=43 // pred_check
          %p321 = pneg %p137
        $region62: #{tpu_custom_call.1} parent=43 // pred_check_branch
          %323 = sbr.rel (%p321) target = $region64
        $region63: #{tpu_custom_call.1} parent=43 // pred_region
          %325 = dma.done [#allocation9], 4096
        $region64: #{tpu_custom_call.1} parent=43 // pred_fallthru
          _
        %s326 = sand.u32 %s35, 1
        %s327 = scalar_lea.sflag [#allocation3], %s326
        %s328 = sand.u32 %s35, 1
        %s329 = smul.addr %s328, 8
        %s330 = scalar_lea.vmem [#allocation2], %s329
        %p331 = pneg %p48
        %p332 = pneg %p45
        %s333 = sand.u32 %s27, 1
        %s334 = scalar_lea.sflag [#allocation6], %s333
        %s335 = sand.u32 %s61, 1
        %s336 = smul.addr %s335, 8
        %s337 = scalar_lea.vmem [#allocation5], %s336
        %p338 = pneg %p74
        %p339 = pneg %p71
        %p340 = pneg %p95
        %p341 = pneg %p92
        %p342 = pneg %p116
        %p343 = pneg %p113
        %p344 = pneg %p137
        %p345 = pneg %p134
        %p346 = pneg %p158
        %p347 = pneg %p155
        %p348 = pneg %p184
        %p349 = pneg %p181
        %s350 = sand.u32 %s171, 1
        %s351 = scalar_lea.sflag [#allocation4], %s350
        %s352 = sand.u32 %s171, 1
        %s353 = smul.addr %s352, 8
        %s354 = scalar_lea.vmem [#allocation11], %s353
        %v355 = vld [vmem:[%s295] sm:$0xff]
        %v356 = vld [vmem:[%s305] sm:$0xff]
        %v357 = vld [vmem:[#allocation7] sm:$0xff]
        %v358 = vld [vmem:[#allocation7 + $0x8] sm:$0xff]
        %v359 = vld [vmem:[#allocation7 + $0x10] sm:$0xff]
        %v360 = vld [vmem:[#allocation7 + $0x18] sm:$0xff]
        %v361 = vld [vmem:[#allocation7 + $0x20] sm:$0xff]
        %v362 = vld [vmem:[#allocation7 + $0x28] sm:$0xff]
        %v363 = vld [vmem:[#allocation7 + $0x30] sm:$0xff]
        %v364 = vld [vmem:[#allocation7 + $0x38] sm:$0xff]
        %v365 = vld [vmem:[#allocation7 + $0x40] sm:$0xff]
        %v366 = vld [vmem:[#allocation7 + $0x48] sm:$0xff]
        %v367 = vld [vmem:[#allocation7 + $0x50] sm:$0xff]
        %v368 = vld [vmem:[#allocation7 + $0x58] sm:$0xff]
        %v369 = vld [vmem:[#allocation7 + $0x60] sm:$0xff]
        %v370 = vld [vmem:[#allocation7 + $0x68] sm:$0xff]
        %v371 = vld [vmem:[#allocation7 + $0x70] sm:$0xff]
        %v372 = vld [vmem:[#allocation7 + $0x78] sm:$0xff]
        %v373 = vld [vmem:[#allocation7 + $0x80] sm:$0xff]
        %v374 = vld [vmem:[#allocation7 + $0x88] sm:$0xff]
        %v375 = vld [vmem:[#allocation7 + $0x90] sm:$0xff]
        %v376 = vld [vmem:[#allocation7 + $0x98] sm:$0xff]
        %v377 = vld [vmem:[#allocation7 + $0xa0] sm:$0xff]
        %v378 = vld [vmem:[#allocation7 + $0xa8] sm:$0xff]
        %v379 = vld [vmem:[#allocation7 + $0xb0] sm:$0xff]
        %v380 = vld [vmem:[#allocation7 + $0xb8] sm:$0xff]
        %v381 = vld [vmem:[#allocation7 + $0xc0] sm:$0xff]
        %v382 = vld [vmem:[#allocation7 + $0xc8] sm:$0xff]
        %v383 = vld [vmem:[#allocation7 + $0xd0] sm:$0xff]
        %v384 = vld [vmem:[#allocation7 + $0xd8] sm:$0xff]
        %v385 = vld [vmem:[#allocation7 + $0xe0] sm:$0xff]
        %v386 = vld [vmem:[#allocation7 + $0xe8] sm:$0xff]
        %v387 = vld [vmem:[#allocation7 + $0xf0] sm:$0xff]
        %v388 = vld [vmem:[#allocation7 + $0xf8] sm:$0xff]
        %v389 = vld [vmem:[#allocation7 + $0x100] sm:$0xff]
        %v390 = vld [vmem:[#allocation7 + $0x108] sm:$0xff]
        %v391 = vld [vmem:[#allocation7 + $0x110] sm:$0xff]
        %v392 = vld [vmem:[#allocation7 + $0x118] sm:$0xff]
        %v393 = vld [vmem:[#allocation7 + $0x120] sm:$0xff]
        %v394 = vld [vmem:[#allocation7 + $0x128] sm:$0xff]
        %v395 = vld [vmem:[#allocation7 + $0x130] sm:$0xff]
        %v396 = vld [vmem:[#allocation7 + $0x138] sm:$0xff]
        %v397 = vld [vmem:[#allocation7 + $0x140] sm:$0xff]
        %v398 = vld [vmem:[#allocation7 + $0x148] sm:$0xff]
        %v399 = vld [vmem:[#allocation7 + $0x150] sm:$0xff]
        %v400 = vld [vmem:[#allocation7 + $0x158] sm:$0xff]
        %v401 = vld [vmem:[#allocation7 + $0x160] sm:$0xff]
        %v402 = vld [vmem:[#allocation7 + $0x168] sm:$0xff]
        %v403 = vld [vmem:[#allocation7 + $0x170] sm:$0xff]
        %v404 = vld [vmem:[#allocation7 + $0x178] sm:$0xff]
        %v405 = vld [vmem:[#allocation8] sm:$0x7]
        %v407 = vperm.slane %v405, 0
        %v408 = vperm.slane %v405, 1
        %v409 = vperm.slane %v405, 2
        %413 = vmatpush.msra.mxu0 %v402
        %414 = vmatpush.msra.mxu0 %v399
        %415 = vmatpush.msra.mxu0 %v396
        %416 = vmatpush.msra.mxu0 %v393
        %417 = vmatpush.msra.mxu0 %v390
        %418 = vmatpush.msra.mxu0 %v387
        %419 = vmatpush.msra.mxu0 %v384
        %420 = vmatpush.msra.mxu0 %v381
        %421 = vmatpush.msra.mxu0 %v378
        %422 = vmatpush.msra.mxu0 %v375
        %423 = vmatpush.msra.mxu0 %v372
        %424 = vmatpush.msra.mxu0 %v369
        %425 = vmatpush.msra.mxu0 %v366
        %426 = vmatpush.msra.mxu0 %v363
        %427 = vmatpush.msra.mxu0 %v360
        %428 = vmatpush.msra.mxu0 %v357
        %429 = vmatmul.f32.gmra.mxu0 %v355
        %v430 = vpop.f32.mrf.mxu0
        %v431 = vadd.f32 %v407, %v430
        %432 = vdwg.mxu0
        %433 = vmatpush.msra.mxu0 %v403
        %434 = vmatpush.msra.mxu0 %v400
        %435 = vmatpush.msra.mxu0 %v397
        %436 = vmatpush.msra.mxu0 %v394
        %437 = vmatpush.msra.mxu0 %v391
        %438 = vmatpush.msra.mxu0 %v388
        %439 = vmatpush.msra.mxu0 %v385
        %440 = vmatpush.msra.mxu0 %v382
        %441 = vmatpush.msra.mxu0 %v379
        %442 = vmatpush.msra.mxu0 %v376
        %443 = vmatpush.msra.mxu0 %v373
        %444 = vmatpush.msra.mxu0 %v370
        %445 = vmatpush.msra.mxu0 %v367
        %446 = vmatpush.msra.mxu0 %v364
        %447 = vmatpush.msra.mxu0 %v361
        %448 = vmatpush.msra.mxu0 %v358
        %449 = vmatmul.f32.gmra.mxu0 %v355
        %v450 = vpop.f32.mrf.mxu0
        %v451 = vadd.f32 %v408, %v450
        %452 = vdwg.mxu0
        %453 = vmatpush.msra.mxu0 %v404
        %454 = vmatpush.msra.mxu0 %v401
        %455 = vmatpush.msra.mxu0 %v398
        %456 = vmatpush.msra.mxu0 %v395
        %457 = vmatpush.msra.mxu0 %v392
        %458 = vmatpush.msra.mxu0 %v389
        %459 = vmatpush.msra.mxu0 %v386
        %460 = vmatpush.msra.mxu0 %v383
        %461 = vmatpush.msra.mxu0 %v380
        %462 = vmatpush.msra.mxu0 %v377
        %463 = vmatpush.msra.mxu0 %v374
        %464 = vmatpush.msra.mxu0 %v371
        %465 = vmatpush.msra.mxu0 %v368
        %466 = vmatpush.msra.mxu0 %v365
        %467 = vmatpush.msra.mxu0 %v362
        %468 = vmatpush.msra.mxu0 %v359
        %469 = vmatmul.f32.gmra.mxu0 %v355
        %v470 = vpop.f32.mrf.mxu0
        %v471 = vadd.f32 %v409, %v470
        %472 = vdwg.mxu0
        %v473 = vld [vmem:[#allocation10] sm:$0xff]
        %v474 = vld [vmem:[#allocation10 + $0x8] sm:$0xff]
        %v475 = vld [vmem:[#allocation10 + $0x10] sm:$0xff]
        %v476 = vld [vmem:[#allocation10 + $0x18] sm:$0xff]
        %v477 = vld [vmem:[#allocation10 + $0x20] sm:$0xff]
        %v478 = vld [vmem:[#allocation10 + $0x28] sm:$0xff]
        %v479 = vld [vmem:[#allocation10 + $0x30] sm:$0xff]
        %v480 = vld [vmem:[#allocation10 + $0x38] sm:$0xff]
        %v481 = vld [vmem:[#allocation10 + $0x40] sm:$0xff]
        %v482 = vld [vmem:[#allocation10 + $0x48] sm:$0xff]
        %v483 = vld [vmem:[#allocation10 + $0x50] sm:$0xff]
        %v484 = vld [vmem:[#allocation10 + $0x58] sm:$0xff]
        %v485 = vld [vmem:[#allocation10 + $0x60] sm:$0xff]
        %v486 = vld [vmem:[#allocation10 + $0x68] sm:$0xff]
        %v487 = vld [vmem:[#allocation10 + $0x70] sm:$0xff]
        %v488 = vld [vmem:[#allocation10 + $0x78] sm:$0xff]
        %v489 = vld [vmem:[#allocation10 + $0x80] sm:$0xff]
        %v490 = vld [vmem:[#allocation10 + $0x88] sm:$0xff]
        %v491 = vld [vmem:[#allocation10 + $0x90] sm:$0xff]
        %v492 = vld [vmem:[#allocation10 + $0x98] sm:$0xff]
        %v493 = vld [vmem:[#allocation10 + $0xa0] sm:$0xff]
        %v494 = vld [vmem:[#allocation10 + $0xa8] sm:$0xff]
        %v495 = vld [vmem:[#allocation10 + $0xb0] sm:$0xff]
        %v496 = vld [vmem:[#allocation10 + $0xb8] sm:$0xff]
        %v497 = vld [vmem:[#allocation10 + $0xc0] sm:$0xff]
        %v498 = vld [vmem:[#allocation10 + $0xc8] sm:$0xff]
        %v499 = vld [vmem:[#allocation10 + $0xd0] sm:$0xff]
        %v500 = vld [vmem:[#allocation10 + $0xd8] sm:$0xff]
        %v501 = vld [vmem:[#allocation10 + $0xe0] sm:$0xff]
        %v502 = vld [vmem:[#allocation10 + $0xe8] sm:$0xff]
        %v503 = vld [vmem:[#allocation10 + $0xf0] sm:$0xff]
        %v504 = vld [vmem:[#allocation10 + $0xf8] sm:$0xff]
        %v505 = vld [vmem:[%s5] sm:$0x3]
        %v507 = vperm.slane %v505, 0
        %v508 = vperm.slane %v505, 1
        %511 = vmatpush.msra.mxu0 %v503
        %512 = vmatpush.msra.mxu0 %v501
        %513 = vmatpush.msra.mxu0 %v499
        %514 = vmatpush.msra.mxu0 %v497
        %515 = vmatpush.msra.mxu0 %v495
        %516 = vmatpush.msra.mxu0 %v493
        %517 = vmatpush.msra.mxu0 %v491
        %518 = vmatpush.msra.mxu0 %v489
        %519 = vmatpush.msra.mxu0 %v487
        %520 = vmatpush.msra.mxu0 %v485
        %521 = vmatpush.msra.mxu0 %v483
        %522 = vmatpush.msra.mxu0 %v481
        %523 = vmatpush.msra.mxu0 %v479
        %524 = vmatpush.msra.mxu0 %v477
        %525 = vmatpush.msra.mxu0 %v475
        %526 = vmatpush.msra.mxu0 %v473
        %527 = vmatmul.f32.gmra.mxu0 %v356
        %v528 = vpop.f32.mrf.mxu0
        %v529 = vadd.f32 %v507, %v528
        %530 = vdwg.mxu0
        %531 = vmatpush.msra.mxu0 %v504
        %532 = vmatpush.msra.mxu0 %v502
        %533 = vmatpush.msra.mxu0 %v500
        %534 = vmatpush.msra.mxu0 %v498
        %535 = vmatpush.msra.mxu0 %v496
        %536 = vmatpush.msra.mxu0 %v494
        %537 = vmatpush.msra.mxu0 %v492
        %538 = vmatpush.msra.mxu0 %v490
        %539 = vmatpush.msra.mxu0 %v488
        %540 = vmatpush.msra.mxu0 %v486
        %541 = vmatpush.msra.mxu0 %v484
        %542 = vmatpush.msra.mxu0 %v482
        %543 = vmatpush.msra.mxu0 %v480
        %544 = vmatpush.msra.mxu0 %v478
        %545 = vmatpush.msra.mxu0 %v476
        %546 = vmatpush.msra.mxu0 %v474
        %547 = vmatmul.f32.gmra.mxu0 %v356
        %v548 = vpop.f32.mrf.mxu0
        %v549 = vadd.f32 %v508, %v548
        %550 = vdwg.mxu0
        %v551 = vadd.f32 %v431, %v529
        %v552 = vtanh.pop %v551
        %v553 = vadd.f32 %v552, 1.0
        %v554 = vadd.f32 %v451, %v549
        %v555 = vxor.u32 %v554, 2147483648
        %v556 = vmul.f32 %v555, 1.442695
        %v557 = vpow.pop %v556
        %v558 = vadd.f32 %v557, 1.0
        %v559 = vrcp.pop %v558
        %v560 = vmul.f32 %v558, %v559
        %v561 = vsub.f32 1.0, %v560
        %v562 = vmul.f32 %v559, %v561
        %v563 = vadd.f32 %v559, %v562
        %vm564 = vweird.f32 %v558
        %vm565 = vweird.f32 %v559
        %vm566 = vmor %vm564, %vm565
        %v567 = vsel %vm566, %v559, %v563
        %v568 = vand.u32 2147483647, %v558
        %vm569 = vcmp.eq.f32.partialorder %v568, 8.507059e+37
        %v570 = vand.u32 %v558, 2147483648
        %v571 = vor.u32 1.1754944e-38, %v570
        %v572 = vsel %vm569, %v571, %v567
        %v573 = vmul.f32 1.0, %v572
        %v574 = vmul.f32 %v573, %v356
        %v575 = vsub.f32 1.0, %v573
        %v576 = vmul.f32 %v553, %v356
        %v577 = vadd.f32 %v471, %v576
        %v578 = vtanh.pop %v577
        %v579 = vmul.f32 %v575, %v578
        %v580 = vadd.f32 %v574, %v579
        %581 = vst [vmem:[%s354] sm:$0xff] %v580
        %s582 = sand.u32 %s171, 1
        %s583 = scalar_lea.sflag [#allocation4], %s582
        %s584 = sand.u32 %s171, 1
        %s585 = smul.addr %s584, 8
        %s586 = scalar_lea.vmem [#allocation11], %s585
        // Predicated region
        $region65: #{tpu_custom_call.1} parent=43 // pred_check
          %p587 = pneg %p181
        $region66: #{tpu_custom_call.1} parent=43 // pred_check_branch
          %589 = sbr.rel (%p587) target = $region68
        $region67: #{tpu_custom_call.1} parent=43 // pred_region
          %591 = vsyncadd %s583, 0
          %s592 = smul.addr %s27, 8
          %s593 = scalar_lea.hbm %s6, %s592
          %s595 = sshll.u32 %s586, 4
          %s596 = int_to_ptr.vmem [resolvable:$true] %s595
          %s597 = sshll.u32 %s593, 4
          %s598 = int_to_ptr.hbm [resolvable:$true] %s597
          %600 = dma.vmem_to_hbm [thread:$0]  %s596, 128, %s598, %s583
        $region68: #{tpu_custom_call.1} parent=43 // pred_fallthru
          _
      $region44: #{tpu_custom_call.1} parent=5 // pred_fallthru
        _
      %p601 = scmp.le.s32.totalorder 2, %s22
      // Predicated region
      $region69: #{tpu_custom_call.1} parent=5 // pred_check
        %p602 = pneg %p601
      $region70: #{tpu_custom_call.1} parent=5 // pred_check_branch
        %604 = sbr.rel (%p602) target = $region72
      $region71: #{tpu_custom_call.1} parent=5 // pred_region
        %s605 = ssub.s32 %s22, 2
        // Predicated region
        $region73: #{tpu_custom_call.1} parent=71 // pred_check
          %p606 = pneg %p187
        $region74: #{tpu_custom_call.1} parent=71 // pred_check_branch
          %608 = sbr.rel (%p606) target = $region76
        $region75: #{tpu_custom_call.1} parent=71 // pred_region
          %s609 = sand.u32 %s172, 1
          %s610 = scalar_lea.sflag [#allocation4], %s609
          %s611 = sand.u32 %s172, 1
          %s612 = smul.addr %s611, 8
          %s613 = scalar_lea.vmem [#allocation11], %s612
          %615 = dma.done %s610, 128
        $region76: #{tpu_custom_call.1} parent=71 // pred_fallthru
          _
      $region72: #{tpu_custom_call.1} parent=5 // pred_fallthru
        _
    $region6: #{tpu_custom_call.1} parent=1 // loop_footer
      %s26 = sadd.s32 1, %s22
    $region7: #{tpu_custom_call.1} parent=1 // loop_footer_branch
      %21 = sbr.rel target = $region3
    $region8: #{tpu_custom_call.1} parent=1 // loop_exit
      _
    %616 = vsyncpa [#allocation3], 1
    %s617 = scalar_lea.sflag [#allocation3], 1
    %618 = vsyncpa %s617, 1
    %619 = vsyncpa [#allocation6], 1
    %s620 = scalar_lea.sflag [#allocation6], 1
    %621 = vsyncpa %s620, 1
    %622 = vsyncpa [#allocation9], 1
    %623 = vsyncpa [#allocation4], 1
    %s624 = scalar_lea.sflag [#allocation4], 1
    %625 = vsyncpa %s624, 1

</llo_original>
